<compile_context>
chip_gen: v6e
topology: v6e:2x2x1
jax: 0.10.0
libtpu: 0.0.40
codegen_flags: <defaults>
</compile_context>

<pallas_src>
import functools

import jax
import jax.numpy as jnp
from jax.experimental import pallas as pl
from jax.experimental.pallas import tpu as pltpu

LANE = 128               # TPU lane width; feature dims padded up to this.
VALUE_LANE = LANE - 1    # lane of the output slab carrying the critic value.
NEG_BIG = -1e30          # finite "-inf" for masking non-logit lanes in softmax.
MAX_TILE_B = 2048        # batch tile cap (working set ~10 MiB f32 at this size).
VMEM_LIMIT_BYTES = 48 * 1024 * 1024   # safe on v5e/v6e (128 MiB) and v7x (64 MiB).


def _round_up(n, m):
    return ((n + m - 1) // m) * m


def actor_critic_kernel(
    x_ref,                 # (TILE_B, input_dim)  unpadded lanes
    ws_ref, bs_ref,        # shared trunk: (input_dim, 128), (1, 128)
    w1_ref, b1_ref,        # fused head-1: (128, 256), (1, 256)  == [actor | critic]
    w2_ref, b2_ref,        # fused head-2: (256, 128), (1, 128)
    out_ref,               # (TILE_B, 128) = probs in lanes [0, action_dim), value in lane 127
    *,
    action_dim,
):
    x = x_ref[...]

    # Shared trunk: h = ReLU(x @ Ws + bs)                       -> (TILE_B, 128)
    h = jnp.dot(x, ws_ref[...], preferred_element_type=jnp.float32) + bs_ref[...]
    h = jnp.maximum(h, 0.0)

    # Fused head-1: one (128, 256) matmul covers actor-L1 and critic-L1.
    hh = jnp.dot(h, w1_ref[...], preferred_element_type=jnp.float32) + b1_ref[...]
    hh = jnp.maximum(hh, 0.0)                                   # ReLU for both heads

    # Fused head-2: one K=256 matmul produces actor logits (lanes < action_dim)
    # and the critic value (lane VALUE_LANE) in a single (TILE_B, 128) tile.
    fused = jnp.dot(hh, w2_ref[...], preferred_element_type=jnp.float32) + b2_ref[...]

    # Softmax over the real action lanes only (value lane + padding masked out).
    lane_ids = jax.lax.broadcasted_iota(jnp.int32, fused.shape, 1)
    logits = jnp.where(lane_ids < action_dim, fused, NEG_BIG)
    m = jnp.max(logits, axis=-1, keepdims=True)
    e = jnp.exp(logits - m)                                     # masked lanes -> 0
    denom = jnp.sum(e, axis=-1, keepdims=True)
    r = pl.reciprocal(denom, approx=True)                       # EUP approx
    r = r * (2.0 - denom * r)                                   # Newton step -> ~exact
    probs = e * r

    # Single lane-dense 128-lane writeback: probs everywhere except the value
    # lane, which carries the critic output (probs there is exactly 0).
    out_ref[...] = jnp.where(lane_ids == VALUE_LANE, fused, probs)


def _pad_to(a, shape):
    out = jnp.zeros(shape, a.dtype)
    return out.at[tuple(slice(0, s) for s in a.shape)].set(a)


def prepare_padded_params(p):
    """Pad lane dims to 128, fuse head-1 (actor|critic) and head-2 (logits|value)."""
    input_dim = p["ws"].shape[0]
    hidden = p["ws"].shape[1]
    action_dim = p["wa2"].shape[1]
    assert action_dim < VALUE_LANE, "value lane must not collide with action lanes"

    # Shared trunk: keep the true input_dim rows (no lane inflation of x).
    ws = _pad_to(p["ws"], (input_dim, LANE))
    bs = _pad_to(p["bs"], (1, LANE))

    # Fused head-1: columns [0,128) actor-L1, columns [128,256) critic-L1.
    wa1 = _pad_to(p["wa1"], (LANE, LANE))
    ba1 = _pad_to(p["ba1"], (1, LANE))
    wc1 = _pad_to(p["wc1"], (LANE, LANE))
    bc1 = _pad_to(p["bc1"], (1, LANE))
    w1 = jnp.concatenate([wa1, wc1], axis=1)      # (128, 256)
    b1 = jnp.concatenate([ba1, bc1], axis=1)      # (1, 256)

    # Fused head-2: rows [0,128) consume the actor branch of hh and feed lanes
    # [0, action_dim); rows [128,256) consume the critic branch and feed lane
    # VALUE_LANE. All other entries are zero.
    w2 = jnp.zeros((2 * LANE, LANE), jnp.float32)
    w2 = w2.at[:hidden, :action_dim].set(p["wa2"])
    w2 = w2.at[LANE:LANE + hidden, VALUE_LANE].set(p["wc2"][:, 0])
    b2 = jnp.zeros((1, LANE), jnp.float32)
    b2 = b2.at[0, :action_dim].set(p["ba2"][0, :])
    b2 = b2.at[0, VALUE_LANE].set(p["bc2"][0, 0])

    return dict(ws=ws, bs=bs, w1=w1, b1=b1, w2=w2, b2=b2)


def _choose_batch_tiling(B):
    """Balanced batch tiles; >=2 grid steps when possible (v7x megacore)."""
    b8 = _round_up(B, 8)
    max_tiles = b8 // 8                             # each tile needs >= 8 rows
    target_tiles = max(2, pl.cdiv(b8, MAX_TILE_B))  # >=2 so both TCs get work
    n_tiles = min(target_tiles, max_tiles)
    tile_b = _round_up(pl.cdiv(b8, n_tiles), 8)
    b_pad = _round_up(b8, tile_b)
    return b_pad, tile_b


def actor_critic_forward(x, padded_params, action_dim):
    """x: (B, input_dim) f32 -> (probs (B, action_dim), value (B, 1))."""
    B, input_dim = x.shape
    b_pad, tile_b = _choose_batch_tiling(B)

    if b_pad == B:
        x_pad = x
    else:
        x_pad = jnp.zeros((b_pad, input_dim), jnp.float32).at[:B, :].set(x)

    kernel = functools.partial(actor_critic_kernel, action_dim=action_dim)

    def wspec(shape):
        # Weights / biases: full-array block, pinned to block (0, 0) for every
        # grid step, so they stay VMEM-resident across batch tiles.
        # TODO(synk): pipeline_mode=pl.Buffered(1) would drop the redundant
        # second buffer (~minor VMEM headroom win).
        return pl.BlockSpec(shape, lambda i: (0, 0))

    out = pl.pallas_call(
        kernel,
        out_shape=jax.ShapeDtypeStruct((b_pad, LANE), jnp.float32),
        grid_spec=pltpu.PrefetchScalarGridSpec(
            num_scalar_prefetch=0,
            grid=(b_pad // tile_b,),
            in_specs=[
                pl.BlockSpec((tile_b, input_dim), lambda i: (i, 0)),  # x (unpadded lanes)
                wspec((input_dim, LANE)),   # ws
                wspec((1, LANE)),           # bs
                wspec((LANE, 2 * LANE)),    # w1 (fused actor|critic head-1)
                wspec((1, 2 * LANE)),       # b1
                wspec((2 * LANE, LANE)),    # w2 (fused logits|value head-2)
                wspec((1, LANE)),           # b2
            ],
            out_specs=pl.BlockSpec((tile_b, LANE), lambda i: (i, 0)),
        ),
        compiler_params=pltpu.CompilerParams(
            dimension_semantics=("parallel",),
            vmem_limit_bytes=VMEM_LIMIT_BYTES,
        ),
    )(
        x_pad,
        padded_params["ws"], padded_params["bs"],
        padded_params["w1"], padded_params["b1"],
        padded_params["w2"], padded_params["b2"],
    )

    probs = out[:B, :action_dim]
    value = out[:B, VALUE_LANE:VALUE_LANE + 1]
    return probs, value


def init_params(key, input_dim, action_dim, hidden_dim):
    """Deterministic synthetic parameters (shapes match the nn.Module)."""
    ks = jax.random.split(key, 10)

    def lin(kw, kb, fan_in, fan_out):
        bound = 1.0 / jnp.sqrt(jnp.float32(fan_in))
        w = jax.random.uniform(kw, (fan_in, fan_out), jnp.float32, -bound, bound)
        b = jax.random.uniform(kb, (1, fan_out), jnp.float32, -bound, bound)
        return w, b

    ws, bs = lin(ks[0], ks[1], input_dim, hidden_dim)
    wa1, ba1 = lin(ks[2], ks[3], hidden_dim, hidden_dim)
    wa2, ba2 = lin(ks[4], ks[5], hidden_dim, action_dim)
    wc1, bc1 = lin(ks[6], ks[7], hidden_dim, hidden_dim)
    wc2, bc2 = lin(ks[8], ks[9], hidden_dim, 1)
    return dict(ws=ws, bs=bs, wa1=wa1, ba1=ba1, wa2=wa2, ba2=ba2,
                wc1=wc1, bc1=bc1, wc2=wc2, bc2=bc2)


def reference_forward(x, p):
    """Pure-JAX reference matching the PyTorch module semantics."""
    h = jnp.maximum(x @ p["ws"] + p["bs"], 0.0)
    a = jnp.maximum(h @ p["wa1"] + p["ba1"], 0.0)
    logits = a @ p["wa2"] + p["ba2"]
    probs = jax.nn.softmax(logits, axis=-1)
    c = jnp.maximum(h @ p["wc1"] + p["bc1"], 0.0)
    value = c @ p["wc2"] + p["bc2"]
    return probs, value


if __name__ == "__main__":
    # Small shapes implied by the module: x is (batch, input_dim).
    batch, input_dim, action_dim, hidden_dim = 8, 16, 4, 64

    key = jax.random.PRNGKey(0)
    kx, kp = jax.random.split(key)
    x = jax.random.normal(kx, (batch, input_dim), dtype=jnp.float32)
    params = init_params(kp, input_dim, action_dim, hidden_dim)
    padded = prepare_padded_params(params)

    probs, value = actor_critic_forward(x, padded, action_dim)
    probs = jax.block_until_ready(probs)
    value = jax.block_until_ready(value)

    # Sanity check against the pure-JAX reference.
    ref_probs, ref_value = reference_forward(x, params)
    assert probs.shape == (batch, action_dim)
    assert value.shape == (batch, 1)
    assert jnp.allclose(probs, ref_probs, atol=1e-5, rtol=1e-5)
    assert jnp.allclose(value, ref_value, atol=1e-5, rtol=1e-5)
    assert jnp.allclose(jnp.sum(probs, axis=-1), 1.0, atol=1e-5)

    print("KERNEL_OK")
</pallas_src>

<mosaic_0001>
module attributes {stable_mosaic.version = 11 : i64} {
  func.func @actor_critic_kernel(%arg0: i32, %arg1: memref<8x16xf32, #tpu.memory_space<vmem>>, %arg2: memref<16x128xf32, #tpu.memory_space<vmem>>, %arg3: memref<1x128xf32, #tpu.memory_space<vmem>>, %arg4: memref<128x256xf32, #tpu.memory_space<vmem>>, %arg5: memref<1x256xf32, #tpu.memory_space<vmem>>, %arg6: memref<256x128xf32, #tpu.memory_space<vmem>>, %arg7: memref<1x128xf32, #tpu.memory_space<vmem>>, %arg8: memref<8x128xf32, #tpu.memory_space<vmem>>) attributes {dimension_semantics = [#tpu.dimension_semantics<parallel>], iteration_bounds = array<i64: 1>, scalar_prefetch = 0 : i64, scratch_operands = 0 : i64, tpu.core_type = #tpu.core_type<tc>, window_params = [{transform_indices = @transform_0, window_bounds = array<i64: 8, 16>}, {pipeline_mode = #tpu.pipeline_mode<synchronous>, transform_indices = @transform_1, window_bounds = array<i64: 16, 128>}, {pipeline_mode = #tpu.pipeline_mode<synchronous>, transform_indices = @transform_2, window_bounds = array<i64: 1, 128>}, {pipeline_mode = #tpu.pipeline_mode<synchronous>, transform_indices = @transform_3, window_bounds = array<i64: 128, 256>}, {pipeline_mode = #tpu.pipeline_mode<synchronous>, transform_indices = @transform_4, window_bounds = array<i64: 1, 256>}, {pipeline_mode = #tpu.pipeline_mode<synchronous>, transform_indices = @transform_5, window_bounds = array<i64: 256, 128>}, {pipeline_mode = #tpu.pipeline_mode<synchronous>, transform_indices = @transform_6, window_bounds = array<i64: 1, 128>}, {transform_indices = @transform_7, window_bounds = array<i64: 8, 128>}]} {
    %c0 = arith.constant 0 : index
    %c0_0 = arith.constant 0 : index
    %0 = vector.load %arg1[%c0, %c0_0] : memref<8x16xf32, #tpu.memory_space<vmem>>, vector<8x16xf32>
    %c0_1 = arith.constant 0 : index
    %c0_2 = arith.constant 0 : index
    %1 = vector.load %arg2[%c0_1, %c0_2] : memref<16x128xf32, #tpu.memory_space<vmem>>, vector<16x128xf32>
    %cst = arith.constant dense<0.000000e+00> : vector<8x128xf32>
    %2 = tpu.matmul %0, %1, %cst {dimension_numbers = #tpu.dot_dimension_numbers<[1], [0], [0], [1], [0, 0, 1, 1], [], []>} : vector<8x16xf32>, vector<16x128xf32>, vector<8x128xf32> -> vector<8x128xf32>
    %c0_3 = arith.constant 0 : index
    %c0_4 = arith.constant 0 : index
    %3 = vector.load %arg3[%c0_3, %c0_4] : memref<1x128xf32, #tpu.memory_space<vmem>>, vector<1x128xf32>
    %4 = vector.broadcast %3 : vector<1x128xf32> to vector<8x128xf32>
    %5 = arith.addf %2, %4 : vector<8x128xf32>
    %cst_5 = arith.constant 0.000000e+00 : f32
    %6 = vector.broadcast %cst_5 : f32 to vector<8x128xf32>
    %7 = arith.maximumf %5, %6 : vector<8x128xf32>
    %c0_6 = arith.constant 0 : index
    %c0_7 = arith.constant 0 : index
    %8 = vector.load %arg4[%c0_6, %c0_7] : memref<128x256xf32, #tpu.memory_space<vmem>>, vector<128x256xf32>
    %cst_8 = arith.constant dense<0.000000e+00> : vector<8x256xf32>
    %9 = tpu.matmul %7, %8, %cst_8 {dimension_numbers = #tpu.dot_dimension_numbers<[1], [0], [0], [1], [0, 0, 1, 1], [], []>} : vector<8x128xf32>, vector<128x256xf32>, vector<8x256xf32> -> vector<8x256xf32>
    %c0_9 = arith.constant 0 : index
    %c0_10 = arith.constant 0 : index
    %10 = vector.load %arg5[%c0_9, %c0_10] : memref<1x256xf32, #tpu.memory_space<vmem>>, vector<1x256xf32>
    %11 = vector.broadcast %10 : vector<1x256xf32> to vector<8x256xf32>
    %12 = arith.addf %9, %11 : vector<8x256xf32>
    %cst_11 = arith.constant 0.000000e+00 : f32
    %13 = vector.broadcast %cst_11 : f32 to vector<8x256xf32>
    %14 = arith.maximumf %12, %13 : vector<8x256xf32>
    %c0_12 = arith.constant 0 : index
    %c0_13 = arith.constant 0 : index
    %15 = vector.load %arg6[%c0_12, %c0_13] : memref<256x128xf32, #tpu.memory_space<vmem>>, vector<256x128xf32>
    %cst_14 = arith.constant dense<0.000000e+00> : vector<8x128xf32>
    %16 = tpu.matmul %14, %15, %cst_14 {dimension_numbers = #tpu.dot_dimension_numbers<[1], [0], [0], [1], [0, 0, 1, 1], [], []>} : vector<8x256xf32>, vector<256x128xf32>, vector<8x128xf32> -> vector<8x128xf32>
    %c0_15 = arith.constant 0 : index
    %c0_16 = arith.constant 0 : index
    %17 = vector.load %arg7[%c0_15, %c0_16] : memref<1x128xf32, #tpu.memory_space<vmem>>, vector<1x128xf32>
    %18 = vector.broadcast %17 : vector<1x128xf32> to vector<8x128xf32>
    %19 = arith.addf %16, %18 : vector<8x128xf32>
    %20 = tpu.iota {dimensions = array<i32: 1>} : vector<8x128xi32>
    %c4_i32 = arith.constant 4 : i32
    %21 = vector.broadcast %c4_i32 : i32 to vector<8x128xi32>
    %22 = arith.cmpi slt, %20, %21 : vector<8x128xi32>
    %cst_17 = arith.constant -1.000000e+30 : f32
    %23 = vector.broadcast %cst_17 : f32 to vector<8x128xf32>
    %24 = arith.select %22, %19, %23 : vector<8x128xi1>, vector<8x128xf32>
    %cst_18 = arith.constant dense<0xFF800000> : vector<8xf32>
    %25 = vector.multi_reduction <maximumf>, %24, %cst_18 [1] : vector<8x128xf32> to vector<8xf32>
    %26 = vector.shape_cast %25 : vector<8xf32> to vector<8x1xf32>
    %27 = vector.broadcast %26 : vector<8x1xf32> to vector<8x128xf32>
    %28 = arith.subf %24, %27 : vector<8x128xf32>
    %29 = math.exp %28 : vector<8x128xf32>
    %cst_19 = arith.constant dense<0.000000e+00> : vector<8xf32>
    %30 = vector.multi_reduction <add>, %29, %cst_19 [1] : vector<8x128xf32> to vector<8xf32>
    %31 = vector.shape_cast %30 : vector<8xf32> to vector<8x1xf32>
    %32 = tpu.reciprocal %31 {approx = true} : vector<8x1xf32> -> vector<8x1xf32>
    %33 = arith.mulf %31, %32 : vector<8x1xf32>
    %cst_20 = arith.constant 2.000000e+00 : f32
    %34 = vector.broadcast %cst_20 : f32 to vector<8x1xf32>
    %35 = arith.subf %34, %33 : vector<8x1xf32>
    %36 = arith.mulf %32, %35 : vector<8x1xf32>
    %37 = vector.broadcast %36 : vector<8x1xf32> to vector<8x128xf32>
    %38 = arith.mulf %29, %37 : vector<8x128xf32>
    %c127_i32 = arith.constant 127 : i32
    %39 = vector.broadcast %c127_i32 : i32 to vector<8x128xi32>
    %40 = arith.cmpi eq, %20, %39 : vector<8x128xi32>
    %41 = arith.select %40, %19, %38 : vector<8x128xi1>, vector<8x128xf32>
    %c0_21 = arith.constant 0 : index
    %c0_22 = arith.constant 0 : index
    %42 = vector.load %arg8[%c0_21, %c0_22] : memref<8x128xf32, #tpu.memory_space<vmem>>, vector<8x128xf32>
    tpu.vector_store %arg8[%c0_21, %c0_22], %41 {strides = array<i32>} : memref<8x128xf32, #tpu.memory_space<vmem>>, vector<8x128xf32>,
    return
  }
  func.func @transform_0(%arg0: i32) -> (i32, i32) {
    %c0_i32 = arith.constant 0 : i32
    %c0_i32_0 = arith.constant 0 : i32
    return %arg0, %c0_i32 : i32, i32
  }
  func.func @transform_1(%arg0: i32) -> (i32, i32) {
    %c0_i32 = arith.constant 0 : i32
    %c0_i32_0 = arith.constant 0 : i32
    %c0_i32_1 = arith.constant 0 : i32
    return %c0_i32, %c0_i32_0 : i32, i32
  }
  func.func @transform_2(%arg0: i32) -> (i32, i32) {
    %c0_i32 = arith.constant 0 : i32
    %c0_i32_0 = arith.constant 0 : i32
    %c0_i32_1 = arith.constant 0 : i32
    return %c0_i32, %c0_i32_0 : i32, i32
  }
  func.func @transform_3(%arg0: i32) -> (i32, i32) {
    %c0_i32 = arith.constant 0 : i32
    %c0_i32_0 = arith.constant 0 : i32
    %c0_i32_1 = arith.constant 0 : i32
    return %c0_i32, %c0_i32_0 : i32, i32
  }
  func.func @transform_4(%arg0: i32) -> (i32, i32) {
    %c0_i32 = arith.constant 0 : i32
    %c0_i32_0 = arith.constant 0 : i32
    %c0_i32_1 = arith.constant 0 : i32
    return %c0_i32, %c0_i32_0 : i32, i32
  }
  func.func @transform_5(%arg0: i32) -> (i32, i32) {
    %c0_i32 = arith.constant 0 : i32
    %c0_i32_0 = arith.constant 0 : i32
    %c0_i32_1 = arith.constant 0 : i32
    return %c0_i32, %c0_i32_0 : i32, i32
  }
  func.func @transform_6(%arg0: i32) -> (i32, i32) {
    %c0_i32 = arith.constant 0 : i32
    %c0_i32_0 = arith.constant 0 : i32
    %c0_i32_1 = arith.constant 0 : i32
    return %c0_i32, %c0_i32_0 : i32, i32
  }
  func.func @transform_7(%arg0: i32) -> (i32, i32) {
    %c0_i32 = arith.constant 0 : i32
    %c0_i32_0 = arith.constant 0 : i32
    return %arg0, %c0_i32 : i32, i32
  }
}

</mosaic_0001>

<llo_original>
// kernel: tpu_custom_call.1
$region0: #{tpu_custom_call.1}
  #allocation0 [shape = 'u32[]', space=smem, size = 0x4, offset = 0x4, fixed_abs, tag = 'smem constant byte address 0x4 - core index']
  #allocation1 [shape = 'u32[144,128]{1,0:T(1,128)}', space=vmem, size = 0x12000, scoped, tag = 'internal scratch']
  %s0 = inlined_call_operand.hbm [shape: f32[8,16], index: 0, kind: input, shape index: {}]
  %s1 = inlined_call_operand.hbm [shape: f32[16,128], index: 1, kind: input, shape index: {}]
  %s2 = inlined_call_operand.vmem [shape: f32[1,128], index: 2, kind: input, shape index: {}]
  %s3 = inlined_call_operand.hbm [shape: f32[128,256], index: 3, kind: input, shape index: {}]
  %s4 = inlined_call_operand.vmem [shape: f32[1,256], index: 4, kind: input, shape index: {}]
  %s5 = inlined_call_operand.hbm [shape: f32[256,128], index: 5, kind: input, shape index: {}]
  %s6 = inlined_call_operand.vmem [shape: f32[1,128], index: 6, kind: input, shape index: {}]
  %s7 = inlined_call_operand.hbm [shape: f32[8,128], index: 7, kind: output, shape index: {}]
  %s8 = sld [smem:[#allocation0]]
  $region54: #{tpu_custom_call.1} parent=0
    _
  %s10 = ssub.s32 1, %s8
  %s11 = scalar_select 0, %s10, %s8
  $region1: #{tpu_custom_call.1} parent=0
    #allocation2 [shape = 'u8[4096]{0}', space=vmem, size = 0x1000, scoped, tag = 'input window, operand 0, single buffered']
    #allocation3 [shape = 's32[1]{0}', space=sflag, size = 0x4, scoped, tag = 'scoped memory for tpu_custom_call.1']
    #allocation4 [shape = 's32[1]{0}', space=sflag, size = 0x4, scoped, tag = 'scoped memory for tpu_custom_call.1']
    #allocation5 [shape = 'u8[8192]{0}', space=vmem, size = 0x2000, scoped, tag = 'input window, operand 1, single buffered']
    #allocation6 [shape = 's32[1]{0}', space=sflag, size = 0x4, scoped, tag = 'scoped memory for tpu_custom_call.1']
    #allocation7 [shape = 'u8[131072]{0}', space=vmem, size = 0x20000, scoped, tag = 'input window, operand 3, single buffered']
    #allocation8 [shape = 'u8[131072]{0}', space=vmem, size = 0x20000, scoped, tag = 'input window, operand 5, single buffered']
    #allocation9 [shape = 's32[1]{0}', space=sflag, size = 0x4, scoped, tag = 'scoped memory for tpu_custom_call.1']
    #allocation10 [shape = 'u8[4096]{0}', space=vmem, size = 0x1000, scoped, tag = 'output window, operand 0, single buffered']
    %12 = vsyncpa [#allocation3], 0
    %13 = vsyncpa [#allocation6], 0
    %14 = vsyncpa [#allocation9], 0
    %15 = vsyncpa [#allocation4], 0
    // Predicated region
    $region2: #{tpu_custom_call.1} parent=1 // pred_check
      _
    $region3: #{tpu_custom_call.1} parent=1 // pred_check_branch
      %17 = sbr.rel (0) target = $region5
    $region4: #{tpu_custom_call.1} parent=1 // pred_region
      %s19 = ssub.s32 128, 128
      %20 = vsyncadd [#allocation3], %s19
      %s22 = sshll.u32 [#allocation2], 4
      %s23 = int_to_ptr.vmem [resolvable:$true] %s22
      %25 = dma.hbm_to_vmem [thread:$0]  %s0, 128, %s23, [#allocation3]
    $region5: #{tpu_custom_call.1} parent=1 // pred_fallthru
      _
    // Predicated region
    $region6: #{tpu_custom_call.1} parent=1 // pred_check
      _
    $region7: #{tpu_custom_call.1} parent=1 // pred_check_branch
      %27 = sbr.rel (0) target = $region9
    $region8: #{tpu_custom_call.1} parent=1 // pred_region
      %s29 = ssub.s32 256, 256
      %30 = vsyncadd [#allocation6], %s29
      %s31 = sshll.u32 [#allocation5], 4
      %s32 = int_to_ptr.vmem [resolvable:$true] %s31
      %37 = dma.hbm_to_vmem [thread:$0]  %s1, 256, %s32, [#allocation6], 128, 128, 8
    $region9: #{tpu_custom_call.1} parent=1 // pred_fallthru
      _
    // Predicated region
    $region10: #{tpu_custom_call.1} parent=1 // pred_check
      _
    $region11: #{tpu_custom_call.1} parent=1 // pred_check_branch
      %39 = sbr.rel (0) target = $region13
    $region12: #{tpu_custom_call.1} parent=1 // pred_region
      _
    $region13: #{tpu_custom_call.1} parent=1 // pred_fallthru
      _
    // Predicated region
    $region14: #{tpu_custom_call.1} parent=1 // pred_check
      _
    $region15: #{tpu_custom_call.1} parent=1 // pred_check_branch
      %41 = sbr.rel (0) target = $region17
    $region16: #{tpu_custom_call.1} parent=1 // pred_region
      %s43 = ssub.s32 4096, 4096
      %44 = vsyncadd [#allocation6], %s43
      %s45 = sshll.u32 [#allocation7], 4
      %s46 = int_to_ptr.vmem [resolvable:$true] %s45
      %51 = dma.hbm_to_vmem [thread:$0]  %s3, 4096, %s46, [#allocation6], 256, 256, 16
    $region17: #{tpu_custom_call.1} parent=1 // pred_fallthru
      _
    // Predicated region
    $region18: #{tpu_custom_call.1} parent=1 // pred_check
      _
    $region19: #{tpu_custom_call.1} parent=1 // pred_check_branch
      %53 = sbr.rel (0) target = $region21
    $region20: #{tpu_custom_call.1} parent=1 // pred_region
      _
    $region21: #{tpu_custom_call.1} parent=1 // pred_fallthru
      _
    // Predicated region
    $region22: #{tpu_custom_call.1} parent=1 // pred_check
      _
    $region23: #{tpu_custom_call.1} parent=1 // pred_check_branch
      %55 = sbr.rel (0) target = $region25
    $region24: #{tpu_custom_call.1} parent=1 // pred_region
      %s57 = ssub.s32 4096, 4096
      %58 = vsyncadd [#allocation9], %s57
      %s59 = sshll.u32 [#allocation8], 4
      %s60 = int_to_ptr.vmem [resolvable:$true] %s59
      %65 = dma.hbm_to_vmem [thread:$0]  %s5, 4096, %s60, [#allocation9], 128, 128, 8
    $region25: #{tpu_custom_call.1} parent=1 // pred_fallthru
      _
    // Predicated region
    $region26: #{tpu_custom_call.1} parent=1 // pred_check
      _
    $region27: #{tpu_custom_call.1} parent=1 // pred_check_branch
      %67 = sbr.rel (0) target = $region29
    $region28: #{tpu_custom_call.1} parent=1 // pred_region
      _
    $region29: #{tpu_custom_call.1} parent=1 // pred_fallthru
      _
    // Predicated region
    $region30: #{tpu_custom_call.1} parent=1 // pred_check
      _
    $region31: #{tpu_custom_call.1} parent=1 // pred_check_branch
      %69 = sbr.rel (0) target = $region33
    $region32: #{tpu_custom_call.1} parent=1 // pred_region
      %70 = dma.done [#allocation3], 128
    $region33: #{tpu_custom_call.1} parent=1 // pred_fallthru
      _
    // Predicated region
    $region34: #{tpu_custom_call.1} parent=1 // pred_check
      _
    $region35: #{tpu_custom_call.1} parent=1 // pred_check_branch
      %72 = sbr.rel (0) target = $region37
    $region36: #{tpu_custom_call.1} parent=1 // pred_region
      %73 = dma.done [#allocation6], 256
    $region37: #{tpu_custom_call.1} parent=1 // pred_fallthru
      _
    // Predicated region
    $region38: #{tpu_custom_call.1} parent=1 // pred_check
      _
    $region39: #{tpu_custom_call.1} parent=1 // pred_check_branch
      %75 = sbr.rel (0) target = $region41
    $region40: #{tpu_custom_call.1} parent=1 // pred_region
      %76 = dma.done [#allocation6], 4096
    $region41: #{tpu_custom_call.1} parent=1 // pred_fallthru
      _
    // Predicated region
    $region42: #{tpu_custom_call.1} parent=1 // pred_check
      _
    $region43: #{tpu_custom_call.1} parent=1 // pred_check_branch
      %78 = sbr.rel (0) target = $region45
    $region44: #{tpu_custom_call.1} parent=1 // pred_region
      %79 = dma.done [#allocation9], 4096
    $region45: #{tpu_custom_call.1} parent=1 // pred_fallthru
      _
    %v80 = vld [vmem:[#allocation2] sm:$0xff]
    %v81 = vld [vmem:[#allocation5] sm:$0xff]
    %v82 = vld [vmem:[#allocation5 + $0x8] sm:$0xff]
    %v83 = vld [vmem:[%s2] sm:$0x1]
    %v85 = vlaneseq
    %v86 = vshrl.u32 %v85, 7
    %v87 = vsub.s32 0, %v86
    %v88 = vrot.slane %v83, %v87
    %vm90 = vcmask 130048
    %v92 = vsel %vm90, %v80, 0
    %94 = vmatprep.subr.mxu0 0.0
    %95 = vmatpush1.msra.mxu0 0.0
    %96 = vmatprep.subr.mxu0 0.0
    %97 = vmatpush1.msra.mxu0 0.0
    %98 = vmatprep.subr.mxu0 0.0
    %99 = vmatpush1.msra.mxu0 0.0
    %100 = vmatprep.subr.mxu0 0.0
    %101 = vmatpush1.msra.mxu0 0.0
    %102 = vmatprep.subr.mxu0 0.0
    %103 = vmatpush1.msra.mxu0 0.0
    %104 = vmatprep.subr.mxu0 0.0
    %105 = vmatpush1.msra.mxu0 0.0
    %106 = vmatprep.subr.mxu0 0.0
    %107 = vmatpush1.msra.mxu0 0.0
    %108 = vmatprep.subr.mxu0 0.0
    %109 = vmatpush1.msra.mxu0 0.0
    %110 = vmatprep.subr.mxu0 0.0
    %111 = vmatpush1.msra.mxu0 0.0
    %112 = vmatprep.subr.mxu0 0.0
    %113 = vmatpush1.msra.mxu0 0.0
    %114 = vmatprep.subr.mxu0 0.0
    %115 = vmatpush1.msra.mxu0 0.0
    %116 = vmatprep.subr.mxu0 0.0
    %117 = vmatpush1.msra.mxu0 0.0
    %118 = vmatprep.subr.mxu0 0.0
    %119 = vmatpush1.msra.mxu0 0.0
    %120 = vmatprep.subr.mxu0 0.0
    %121 = vmatpush1.msra.mxu0 0.0
    %122 = vmatprep.subr.mxu0 0.0
    %123 = vmatpush1.msra.mxu0 %v82
    %124 = vmatprep.subr.mxu0 0.0
    %125 = vmatpush1.msra.mxu0 %v81
    %126 = vmatprep.subr.mxu0 0.0
    %127 = vmatpush2.msra.mxu0 0.0
    %128 = vmatprep.subr.mxu0 0.0
    %129 = vmatpush2.msra.mxu0 0.0
    %130 = vmatprep.subr.mxu0 0.0
    %131 = vmatpush2.msra.mxu0 0.0
    %132 = vmatprep.subr.mxu0 0.0
    %133 = vmatpush2.msra.mxu0 0.0
    %134 = vmatprep.subr.mxu0 0.0
    %135 = vmatpush2.msra.mxu0 0.0
    %136 = vmatprep.subr.mxu0 0.0
    %137 = vmatpush2.msra.mxu0 0.0
    %138 = vmatprep.subr.mxu0 0.0
    %139 = vmatpush2.msra.mxu0 0.0
    %140 = vmatprep.subr.mxu0 0.0
    %141 = vmatpush2.msra.mxu0 0.0
    %142 = vmatprep.subr.mxu0 0.0
    %143 = vmatpush2.msra.mxu0 0.0
    %144 = vmatprep.subr.mxu0 0.0
    %145 = vmatpush2.msra.mxu0 0.0
    %146 = vmatprep.subr.mxu0 0.0
    %147 = vmatpush2.msra.mxu0 0.0
    %148 = vmatprep.subr.mxu0 0.0
    %149 = vmatpush2.msra.mxu0 0.0
    %150 = vmatprep.subr.mxu0 0.0
    %151 = vmatpush2.msra.mxu0 0.0
    %152 = vmatprep.subr.mxu0 0.0
    %153 = vmatpush2.msra.mxu0 0.0
    %154 = vmatprep.subr.mxu0 0.0
    %155 = vmatpush2.msra.mxu0 0.0
    %156 = vmatprep.subr.mxu0 0.0
    %157 = vmatpush2.msra.mxu0 0.0
    %158 = vmatprep.mubr.f32.mxu0 0.0
    %159 = vmatmul.mubr.f32.gmra.mxu0 %v92
    %v160 = vpop.f32.mrf.mxu0
    %v161 = vadd.f32 %v88, %v160
    %v162 = vpop.f32.mrf.mxu0
    %163 = vdwg.mxu0
    %v164 = vmax.f32 %v161, 0.0
    %v165 = vld [vmem:[#allocation7] sm:$0xff]
    %v166 = vld [vmem:[#allocation7 + $0x8] sm:$0xff]
    %v167 = vld [vmem:[#allocation7 + $0x10] sm:$0xff]
    %v168 = vld [vmem:[#allocation7 + $0x18] sm:$0xff]
    %v169 = vld [vmem:[#allocation7 + $0x20] sm:$0xff]
    %v170 = vld [vmem:[#allocation7 + $0x28] sm:$0xff]
    %v171 = vld [vmem:[#allocation7 + $0x30] sm:$0xff]
    %v172 = vld [vmem:[#allocation7 + $0x38] sm:$0xff]
    %v173 = vld [vmem:[#allocation7 + $0x40] sm:$0xff]
    %v174 = vld [vmem:[#allocation7 + $0x48] sm:$0xff]
    %v175 = vld [vmem:[#allocation7 + $0x50] sm:$0xff]
    %v176 = vld [vmem:[#allocation7 + $0x58] sm:$0xff]
    %v177 = vld [vmem:[#allocation7 + $0x60] sm:$0xff]
    %v178 = vld [vmem:[#allocation7 + $0x68] sm:$0xff]
    %v179 = vld [vmem:[#allocation7 + $0x70] sm:$0xff]
    %v180 = vld [vmem:[#allocation7 + $0x78] sm:$0xff]
    %v181 = vld [vmem:[#allocation7 + $0x80] sm:$0xff]
    %v182 = vld [vmem:[#allocation7 + $0x88] sm:$0xff]
    %v183 = vld [vmem:[#allocation7 + $0x90] sm:$0xff]
    %v184 = vld [vmem:[#allocation7 + $0x98] sm:$0xff]
    %v185 = vld [vmem:[#allocation7 + $0xa0] sm:$0xff]
    %v186 = vld [vmem:[#allocation7 + $0xa8] sm:$0xff]
    %v187 = vld [vmem:[#allocation7 + $0xb0] sm:$0xff]
    %v188 = vld [vmem:[#allocation7 + $0xb8] sm:$0xff]
    %v189 = vld [vmem:[#allocation7 + $0xc0] sm:$0xff]
    %v190 = vld [vmem:[#allocation7 + $0xc8] sm:$0xff]
    %v191 = vld [vmem:[#allocation7 + $0xd0] sm:$0xff]
    %v192 = vld [vmem:[#allocation7 + $0xd8] sm:$0xff]
    %v193 = vld [vmem:[#allocation7 + $0xe0] sm:$0xff]
    %v194 = vld [vmem:[#allocation7 + $0xe8] sm:$0xff]
    %v195 = vld [vmem:[#allocation7 + $0xf0] sm:$0xff]
    %v196 = vld [vmem:[#allocation7 + $0xf8] sm:$0xff]
    %v197 = vld [vmem:[%s4] sm:$0x3]
    %v199 = vlaneseq
    %v200 = vshrl.u32 %v199, 7
    %v201 = vsub.s32 0, %v200
    %v202 = vrot.slane %v197, %v201
    %v203 = vlaneseq
    %v204 = vshrl.u32 %v203, 7
    %v205 = vsub.s32 1, %v204
    %v206 = vrot.slane %v197, %v205
    %209 = vmatprep.subr.mxu0 %v196
    %210 = vmatpush1.msra.mxu0 %v195
    %211 = vmatprep.subr.mxu0 %v194
    %212 = vmatpush1.msra.mxu0 %v193
    %213 = vmatprep.subr.mxu0 %v192
    %214 = vmatpush1.msra.mxu0 %v191
    %215 = vmatprep.subr.mxu0 %v190
    %216 = vmatpush1.msra.mxu0 %v189
    %217 = vmatprep.subr.mxu0 %v188
    %218 = vmatpush1.msra.mxu0 %v187
    %219 = vmatprep.subr.mxu0 %v186
    %220 = vmatpush1.msra.mxu0 %v185
    %221 = vmatprep.subr.mxu0 %v184
    %222 = vmatpush1.msra.mxu0 %v183
    %223 = vmatprep.subr.mxu0 %v182
    %224 = vmatpush1.msra.mxu0 %v181
    %225 = vmatprep.subr.mxu0 %v180
    %226 = vmatpush1.msra.mxu0 %v179
    %227 = vmatprep.subr.mxu0 %v178
    %228 = vmatpush1.msra.mxu0 %v177
    %229 = vmatprep.subr.mxu0 %v176
    %230 = vmatpush1.msra.mxu0 %v175
    %231 = vmatprep.subr.mxu0 %v174
    %232 = vmatpush1.msra.mxu0 %v173
    %233 = vmatprep.subr.mxu0 %v172
    %234 = vmatpush1.msra.mxu0 %v171
    %235 = vmatprep.subr.mxu0 %v170
    %236 = vmatpush1.msra.mxu0 %v169
    %237 = vmatprep.subr.mxu0 %v168
    %238 = vmatpush1.msra.mxu0 %v167
    %239 = vmatprep.subr.mxu0 %v166
    %240 = vmatpush1.msra.mxu0 %v165
    %241 = vmatprep.subr.mxu0 0.0
    %242 = vmatpush2.msra.mxu0 0.0
    %243 = vmatprep.subr.mxu0 0.0
    %244 = vmatpush2.msra.mxu0 0.0
    %245 = vmatprep.subr.mxu0 0.0
    %246 = vmatpush2.msra.mxu0 0.0
    %247 = vmatprep.subr.mxu0 0.0
    %248 = vmatpush2.msra.mxu0 0.0
    %249 = vmatprep.subr.mxu0 0.0
    %250 = vmatpush2.msra.mxu0 0.0
    %251 = vmatprep.subr.mxu0 0.0
    %252 = vmatpush2.msra.mxu0 0.0
    %253 = vmatprep.subr.mxu0 0.0
    %254 = vmatpush2.msra.mxu0 0.0
    %255 = vmatprep.subr.mxu0 0.0
    %256 = vmatpush2.msra.mxu0 0.0
    %257 = vmatprep.subr.mxu0 0.0
    %258 = vmatpush2.msra.mxu0 0.0
    %259 = vmatprep.subr.mxu0 0.0
    %260 = vmatpush2.msra.mxu0 0.0
    %261 = vmatprep.subr.mxu0 0.0
    %262 = vmatpush2.msra.mxu0 0.0
    %263 = vmatprep.subr.mxu0 0.0
    %264 = vmatpush2.msra.mxu0 0.0
    %265 = vmatprep.subr.mxu0 0.0
    %266 = vmatpush2.msra.mxu0 0.0
    %267 = vmatprep.subr.mxu0 0.0
    %268 = vmatpush2.msra.mxu0 0.0
    %269 = vmatprep.subr.mxu0 0.0
    %270 = vmatpush2.msra.mxu0 0.0
    %271 = vmatprep.subr.mxu0 0.0
    %272 = vmatpush2.msra.mxu0 0.0
    %273 = vmatprep.mubr.f32.mxu0 0.0
    %274 = vmatmul.mubr.f32.gmra.mxu0 %v164
    %v275 = vpop.f32.mrf.mxu0
    %v276 = vadd.f32 %v202, %v275
    %v277 = vpop.f32.mrf.mxu0
    %v278 = vadd.f32 %v206, %v277
    %279 = vdwg.mxu0
    %v280 = vmax.f32 %v276, 0.0
    %v281 = vmax.f32 %v278, 0.0
    %v282 = vld [vmem:[#allocation8] sm:$0xff]
    %v283 = vld [vmem:[#allocation8 + $0x8] sm:$0xff]
    %v284 = vld [vmem:[#allocation8 + $0x10] sm:$0xff]
    %v285 = vld [vmem:[#allocation8 + $0x18] sm:$0xff]
    %v286 = vld [vmem:[#allocation8 + $0x20] sm:$0xff]
    %v287 = vld [vmem:[#allocation8 + $0x28] sm:$0xff]
    %v288 = vld [vmem:[#allocation8 + $0x30] sm:$0xff]
    %v289 = vld [vmem:[#allocation8 + $0x38] sm:$0xff]
    %v290 = vld [vmem:[#allocation8 + $0x40] sm:$0xff]
    %v291 = vld [vmem:[#allocation8 + $0x48] sm:$0xff]
    %v292 = vld [vmem:[#allocation8 + $0x50] sm:$0xff]
    %v293 = vld [vmem:[#allocation8 + $0x58] sm:$0xff]
    %v294 = vld [vmem:[#allocation8 + $0x60] sm:$0xff]
    %v295 = vld [vmem:[#allocation8 + $0x68] sm:$0xff]
    %v296 = vld [vmem:[#allocation8 + $0x70] sm:$0xff]
    %v297 = vld [vmem:[#allocation8 + $0x78] sm:$0xff]
    %v298 = vld [vmem:[#allocation8 + $0x80] sm:$0xff]
    %v299 = vld [vmem:[#allocation8 + $0x88] sm:$0xff]
    %v300 = vld [vmem:[#allocation8 + $0x90] sm:$0xff]
    %v301 = vld [vmem:[#allocation8 + $0x98] sm:$0xff]
    %v302 = vld [vmem:[#allocation8 + $0xa0] sm:$0xff]
    %v303 = vld [vmem:[#allocation8 + $0xa8] sm:$0xff]
    %v304 = vld [vmem:[#allocation8 + $0xb0] sm:$0xff]
    %v305 = vld [vmem:[#allocation8 + $0xb8] sm:$0xff]
    %v306 = vld [vmem:[#allocation8 + $0xc0] sm:$0xff]
    %v307 = vld [vmem:[#allocation8 + $0xc8] sm:$0xff]
    %v308 = vld [vmem:[#allocation8 + $0xd0] sm:$0xff]
    %v309 = vld [vmem:[#allocation8 + $0xd8] sm:$0xff]
    %v310 = vld [vmem:[#allocation8 + $0xe0] sm:$0xff]
    %v311 = vld [vmem:[#allocation8 + $0xe8] sm:$0xff]
    %v312 = vld [vmem:[#allocation8 + $0xf0] sm:$0xff]
    %v313 = vld [vmem:[#allocation8 + $0xf8] sm:$0xff]
    %v314 = vld [vmem:[%s6] sm:$0x1]
    %v316 = vlaneseq
    %v317 = vshrl.u32 %v316, 7
    %v318 = vsub.s32 0, %v317
    %v319 = vrot.slane %v314, %v318
    %321 = vmatprep.subr.mxu0 0.0
    %322 = vmatpush1.msra.mxu0 %v297
    %323 = vmatprep.subr.mxu0 0.0
    %324 = vmatpush1.msra.mxu0 %v296
    %325 = vmatprep.subr.mxu0 0.0
    %326 = vmatpush1.msra.mxu0 %v295
    %327 = vmatprep.subr.mxu0 0.0
    %328 = vmatpush1.msra.mxu0 %v294
    %329 = vmatprep.subr.mxu0 0.0
    %330 = vmatpush1.msra.mxu0 %v293
    %331 = vmatprep.subr.mxu0 0.0
    %332 = vmatpush1.msra.mxu0 %v292
    %333 = vmatprep.subr.mxu0 0.0
    %334 = vmatpush1.msra.mxu0 %v291
    %335 = vmatprep.subr.mxu0 0.0
    %336 = vmatpush1.msra.mxu0 %v290
    %337 = vmatprep.subr.mxu0 0.0
    %338 = vmatpush1.msra.mxu0 %v289
    %339 = vmatprep.subr.mxu0 0.0
    %340 = vmatpush1.msra.mxu0 %v288
    %341 = vmatprep.subr.mxu0 0.0
    %342 = vmatpush1.msra.mxu0 %v287
    %343 = vmatprep.subr.mxu0 0.0
    %344 = vmatpush1.msra.mxu0 %v286
    %345 = vmatprep.subr.mxu0 0.0
    %346 = vmatpush1.msra.mxu0 %v285
    %347 = vmatprep.subr.mxu0 0.0
    %348 = vmatpush1.msra.mxu0 %v284
    %349 = vmatprep.subr.mxu0 0.0
    %350 = vmatpush1.msra.mxu0 %v283
    %351 = vmatprep.subr.mxu0 0.0
    %352 = vmatpush1.msra.mxu0 %v282
    %353 = vmatprep.subr.mxu0 0.0
    %354 = vmatpush2.msra.mxu0 %v313
    %355 = vmatprep.subr.mxu0 0.0
    %356 = vmatpush2.msra.mxu0 %v312
    %357 = vmatprep.subr.mxu0 0.0
    %358 = vmatpush2.msra.mxu0 %v311
    %359 = vmatprep.subr.mxu0 0.0
    %360 = vmatpush2.msra.mxu0 %v310
    %361 = vmatprep.subr.mxu0 0.0
    %362 = vmatpush2.msra.mxu0 %v309
    %363 = vmatprep.subr.mxu0 0.0
    %364 = vmatpush2.msra.mxu0 %v308
    %365 = vmatprep.subr.mxu0 0.0
    %366 = vmatpush2.msra.mxu0 %v307
    %367 = vmatprep.subr.mxu0 0.0
    %368 = vmatpush2.msra.mxu0 %v306
    %369 = vmatprep.subr.mxu0 0.0
    %370 = vmatpush2.msra.mxu0 %v305
    %371 = vmatprep.subr.mxu0 0.0
    %372 = vmatpush2.msra.mxu0 %v304
    %373 = vmatprep.subr.mxu0 0.0
    %374 = vmatpush2.msra.mxu0 %v303
    %375 = vmatprep.subr.mxu0 0.0
    %376 = vmatpush2.msra.mxu0 %v302
    %377 = vmatprep.subr.mxu0 0.0
    %378 = vmatpush2.msra.mxu0 %v301
    %379 = vmatprep.subr.mxu0 0.0
    %380 = vmatpush2.msra.mxu0 %v300
    %381 = vmatprep.subr.mxu0 0.0
    %382 = vmatpush2.msra.mxu0 %v299
    %383 = vmatprep.subr.mxu0 0.0
    %384 = vmatpush2.msra.mxu0 %v298
    %385 = vmatprep.mubr.f32.mxu0 %v281
    %386 = vmatmul.mubr.f32.gmra.mxu0 %v280
    %v387 = vpop.f32.mrf.mxu0
    %v388 = vadd.f32 %v319, %v387
    %v389 = vpop.f32.mrf.mxu0
    %390 = vdwg.mxu0
    %v391 = vlaneseq
    %v392 = vand.u32 %v391, 127
    %vm393 = vcmp.lt.s32.totalorder %v392, 4
    %v394 = vsel %vm393, %v388, -1e+30
    %395 = vmax.xlane.f32.xlu0 %v394
    %v396 = vpop.xlane.xlu0 %395
    %v397 = vsub.f32 %v394, %v396
    %v398 = vmul.f32 %v397, 1.442695
    %v399 = vpow.pop %v398
    %400 = vadd.xlane.f32.xlu0 %v399
    %v401 = vpop.xlane.xlu0 %400
    %v402 = vrcp.pop %v401
    %v403 = vmul.f32 %v401, %v402
    %v404 = vsub.f32 2.0, %v403
    %v405 = vmul.f32 %v402, %v404
    %v406 = vmul.f32 %v399, %v405
    %vm407 = vcmp.eq.s32.totalorder %v392, 127
    %v408 = vsel %vm407, %v388, %v406
    %409 = vst [vmem:[#allocation10] sm:$0xff] %v408
    // Predicated region
    $region46: #{tpu_custom_call.1} parent=1 // pred_check
      _
    $region47: #{tpu_custom_call.1} parent=1 // pred_check_branch
      %411 = sbr.rel (0) target = $region49
    $region48: #{tpu_custom_call.1} parent=1 // pred_region
      %s413 = ssub.s32 128, 128
      %414 = vsyncadd [#allocation4], %s413
      %s416 = sshll.u32 [#allocation10], 4
      %s417 = int_to_ptr.vmem [resolvable:$true] %s416
      %419 = dma.vmem_to_hbm [thread:$0]  %s417, 128, %s7, [#allocation4]
    $region49: #{tpu_custom_call.1} parent=1 // pred_fallthru
      _
    // Predicated region
    $region50: #{tpu_custom_call.1} parent=1 // pred_check
      _
    $region51: #{tpu_custom_call.1} parent=1 // pred_check_branch
      %421 = sbr.rel (0) target = $region53
    $region52: #{tpu_custom_call.1} parent=1 // pred_region
      %422 = dma.done [#allocation4], 128
    $region53: #{tpu_custom_call.1} parent=1 // pred_fallthru
      _
    %423 = vsyncpa [#allocation3], 1
    %424 = vsyncpa [#allocation6], 1
    %425 = vsyncpa [#allocation9], 1
    %426 = vsyncpa [#allocation4], 1

</llo_original>
